<compile_context>
chip_gen: v6e
topology: v6e:2x2x1
jax: 0.10.0
libtpu: 0.0.40
codegen_flags: <defaults>
</compile_context>

<pallas_src>
import functools

import jax
import jax.numpy as jnp
from jax.experimental import pallas as pl
from jax.experimental.pallas import tpu as pltpu


def _round_up(x, m):
    return ((x + m - 1) // m) * m


# ---------------------------------------------------------------------------
# Tiled linear (y = x @ w_t), bf16 MXU inputs, f32 accumulation.
# ---------------------------------------------------------------------------
def _matmul_kernel(x_ref, w_ref, o_ref, acc_ref):
    @pl.when(pl.program_id(2) == 0)
    def _init():
        acc_ref[...] = jnp.zeros_like(acc_ref)

    acc_ref[...] += jnp.dot(x_ref[...], w_ref[...],
                            preferred_element_type=jnp.float32)

    @pl.when(pl.program_id(2) == pl.num_programs(2) - 1)
    def _store():
        o_ref[...] = acc_ref[...].astype(o_ref.dtype)


def linear(x, w_t, *, out_dtype=jnp.float32, tm=512, tn=256, tk=1024):
    """x: [T, K], w_t: [K, N] (bf16, pre-transposed) -> [T, N] out_dtype."""
    T, K = x.shape
    Kw, N = w_t.shape
    assert K == Kw
    x = x.astype(jnp.bfloat16)
    w_t = w_t.astype(jnp.bfloat16)     # no-op: weights pre-cast at init

    tm = min(tm, _round_up(T, 8))
    tn = min(tn, _round_up(N, 128))
    tk = min(tk, _round_up(K, 128))
    Tp, Kp, Np = _round_up(T, tm), _round_up(K, tk), _round_up(N, tn)
    if (Tp, Kp) != (T, K):
        x = jnp.pad(x, ((0, Tp - T), (0, Kp - K)))
    if (Kp, Np) != (K, N):
        # No-op for Llama-style dims (multiples of 128); kept only for safety.
        w_t = jnp.pad(w_t, ((0, Kp - K), (0, Np - N)))

    out = pl.pallas_call(
        _matmul_kernel,
        out_shape=jax.ShapeDtypeStruct((Tp, Np), out_dtype),
        grid_spec=pltpu.PrefetchScalarGridSpec(
            num_scalar_prefetch=0,
            grid=(Tp // tm, Np // tn, Kp // tk),
            in_specs=[pl.BlockSpec((tm, tk), lambda i, j, k: (i, k)),
                      pl.BlockSpec((tk, tn), lambda i, j, k: (k, j))],
            out_specs=pl.BlockSpec((tm, tn), lambda i, j, k: (i, j)),
            scratch_shapes=[pltpu.VMEM((tm, tn), jnp.float32)]),
        compiler_params=pltpu.CompilerParams(
            dimension_semantics=("parallel", "parallel", "arbitrary"),
            vmem_limit_bytes=48 * 1024 * 1024),
    )(x, w_t)

    if (Tp, Np) != (T, N):
        out = out[:T, :N]
    return out


# ---------------------------------------------------------------------------
# Flash-style causal GQA attention with fused neox RoPE (on q only).
# ---------------------------------------------------------------------------
def _flash_attn_kernel(q_ref, k_ref, v_ref, cos_ref, sin_ref, o_ref,
                       qrot_scr, m_scr, l_scr, acc_scr, *,
                       scale, group, head_dim, tq, tkv, seq_len):
    # q_ref   : [tq,  group*D]  bf16   (lane-dense, heads of this KV group)
    # k_ref   : [tkv, D]        bf16
    # v_ref   : [tkv, D]        bf16
    # cos_ref : [tq,  D/2]      f32
    # sin_ref : [tq,  D/2]      f32
    # o_ref   : [tq,  group*D]  bf16
    D = head_dim
    half = D // 2
    M = group * tq
    qi = pl.program_id(1)
    ki = pl.program_id(2)
    nk = pl.num_programs(2)

    @pl.when(ki == 0)
    def _init():
        cos = cos_ref[...]
        sin = sin_ref[...]
        # neox RoPE (half split) + pre-scale, once per q tile; fold the GQA
        # group into a single [group*tq, D] slab for the MXU.
        for g in range(group):
            qg = q_ref[:, g * D:(g + 1) * D].astype(jnp.float32)   # [tq, D]
            q1 = qg[:, :half]
            q2 = qg[:, half:]
            rot = jnp.concatenate([q1 * cos - q2 * sin,
                                   q2 * cos + q1 * sin], axis=-1)
            qrot_scr[g * tq:(g + 1) * tq, :] = (rot * scale).astype(
                qrot_scr.dtype)
        m_scr[...] = jnp.full_like(m_scr, -1e30)
        l_scr[...] = jnp.zeros_like(l_scr)
        acc_scr[...] = jnp.zeros_like(acc_scr)

    q_first = qi * tq
    q_last = (qi + 1) * tq - 1
    k_first = ki * tkv
    k_next = (ki + 1) * tkv
    in_range = k_first <= q_last                         # not fully above diag
    interior = jnp.logical_and(k_next <= q_first,        # fully below diag
                               k_next <= seq_len)        # and fully valid

    def _scores():
        # (q * scale) @ k^T — contract D with D, no explicit transpose.
        return jax.lax.dot_general(qrot_scr[...], k_ref[...],
                                   (((1,), (1,)), ((), ())),
                                   preferred_element_type=jnp.float32)  # [M,tkv]

    def _update(s):
        v_t = v_ref[...]
        m_prev = m_scr[...]
        m_new = jnp.maximum(m_prev, jnp.max(s, axis=-1, keepdims=True))
        alpha = jnp.exp(m_prev - m_new)
        p = jnp.exp(s - m_new)
        l_scr[...] = alpha * l_scr[...] + jnp.sum(p, axis=-1, keepdims=True)
        acc_scr[...] = alpha * acc_scr[...] + jnp.dot(
            p.astype(v_t.dtype), v_t, preferred_element_type=jnp.float32)
        m_scr[...] = m_new

    # Regime (b): fully-interior tile — no mask construction at all.
    @pl.when(jnp.logical_and(in_range, interior))
    def _compute_interior():
        _update(_scores())

    # Regime (c): diagonal / boundary tile — build the mask.
    @pl.when(jnp.logical_and(in_range, jnp.logical_not(interior)))
    def _compute_boundary():
        s = _scores()
        # tq is a power of two -> `& (tq-1)` instead of modulo; (M,1)/(1,tkv)
        # iotas instead of full [M,tkv] planes.
        q_off = jax.lax.broadcasted_iota(jnp.int32, (M, 1), 0) & (tq - 1)
        q_pos = q_first + q_off
        k_pos = k_first + jax.lax.broadcasted_iota(jnp.int32, (1, tkv), 1)
        ok = jnp.logical_and(q_pos >= k_pos, k_pos < seq_len)
        _update(jnp.where(ok, s, -1e30))

    @pl.when(ki == nk - 1)
    def _finalize():
        out = acc_scr[...] / l_scr[...]                  # [M, D] f32 (exact)
        # Unfold the GQA group back to the lane-dense [tq, group*D] output.
        for g in range(group):
            o_ref[:, g * D:(g + 1) * D] = out[g * tq:(g + 1) * tq, :].astype(
                o_ref.dtype)


def swiftkv_attention(q, k, v, cos, sin, *, scale, num_heads, num_kv_heads,
                      head_dim, seq_len, tq, tkv):
    """q: [T_pad, nH*D] bf16 (pre-RoPE), k/v: [T_pad, nKV*D] bf16,
    cos/sin: [T_pad, D/2] f32 -> [T_pad, nH*D] bf16 attention output."""
    T_pad = q.shape[0]
    D = head_dim
    half = D // 2
    group = num_heads // num_kv_heads
    assert T_pad % tq == 0 and T_pad % tkv == 0
    assert tq & (tq - 1) == 0, "tq must be a power of two (mask uses & (tq-1))"
    assert D % 128 == 0, "lane-dense per-head blocks require head_dim % 128 == 0"

    kernel = functools.partial(_flash_attn_kernel, scale=scale, group=group,
                               head_dim=D, tq=tq, tkv=tkv, seq_len=seq_len)

    def q_map(kv, qi, ki):
        return (qi, kv)

    def kv_map(kv, qi, ki):
        # Causal clamp: never DMA K/V tiles strictly above the diagonal —
        # they are re-pointed at the (already fetched) diagonal block and
        # their compute is skipped by pl.when inside the kernel.
        return (jnp.minimum(ki, ((qi + 1) * tq - 1) // tkv), kv)

    def rope_map(kv, qi, ki):
        return (qi, 0)

    return pl.pallas_call(
        kernel,
        out_shape=jax.ShapeDtypeStruct((T_pad, num_heads * D), jnp.bfloat16),
        grid_spec=pltpu.PrefetchScalarGridSpec(
            num_scalar_prefetch=0,
            grid=(num_kv_heads, T_pad // tq, T_pad // tkv),
            in_specs=[
                pl.BlockSpec((tq, group * D), q_map),
                pl.BlockSpec((tkv, D), kv_map),
                pl.BlockSpec((tkv, D), kv_map),
                pl.BlockSpec((tq, half), rope_map),
                pl.BlockSpec((tq, half), rope_map),
            ],
            out_specs=pl.BlockSpec((tq, group * D), q_map),
            scratch_shapes=[
                pltpu.VMEM((group * tq, D), jnp.bfloat16),    # rotated+scaled q
                pltpu.VMEM((group * tq, 1), jnp.float32),     # running max
                pltpu.VMEM((group * tq, 1), jnp.float32),     # running denom
                pltpu.VMEM((group * tq, D), jnp.float32),     # output accum
            ]),
        compiler_params=pltpu.CompilerParams(
            dimension_semantics=("parallel", "parallel", "arbitrary"),
            vmem_limit_bytes=48 * 1024 * 1024),
    )(q, k, v, cos, sin)


# ---------------------------------------------------------------------------
# Module wrapper (parameter init, padding, RoPE tables).
# ---------------------------------------------------------------------------
class LlamaSwiftKVAttentionPallas:
    def __init__(self, hidden_size, num_heads, num_kv_heads,
                 rope_theta=10000.0, head_dim=None, key=None):
        assert key is not None
        self.hidden_size = hidden_size
        self.num_heads = num_heads                      # tp_size == 1
        self.num_kv_heads = num_kv_heads
        self.head_dim = head_dim if head_dim is not None else hidden_size // num_heads
        assert self.num_heads % self.num_kv_heads == 0
        assert self.head_dim % 2 == 0
        assert self.head_dim % 128 == 0, \
            "this kernel assumes Llama-style head_dim that is a multiple of 128"
        self.q_size = self.num_heads * self.head_dim
        self.kv_size = self.num_kv_heads * self.head_dim
        assert hidden_size % 128 == 0 and self.q_size % 128 == 0, \
            "Llama-style dims (multiples of 128) keep per-call weight pads no-ops"
        self.scaling = self.head_dim ** (-0.5)
        self.rope_theta = rope_theta

        k1, k2 = jax.random.split(key)
        # torch.nn.Linear-style weights [out, in]; pre-transposed + bf16 at init
        # so the matmul kernel never pads/casts them per call.
        wq = 0.05 * jax.random.normal(k1, (self.q_size, hidden_size), jnp.float32)
        wo = 0.05 * jax.random.normal(k2, (hidden_size, self.q_size), jnp.float32)
        self.wq_t = jnp.asarray(wq.T, jnp.bfloat16)      # [hidden, q_size]
        self.wo_t = jnp.asarray(wo.T, jnp.bfloat16)      # [q_size, hidden]
        # TODO(synk): kv_proj_swiftkv is declared in the reference __init__ but
        # never called in forward(); it is intentionally not materialized.

    def _rope_tables(self, positions, t_pad):
        T = positions.shape[0]
        if t_pad != T:
            positions = jnp.pad(positions, (0, t_pad - T))
        half = self.head_dim // 2
        inv_freq = 1.0 / (self.rope_theta ** (
            jnp.arange(half, dtype=jnp.float32) * 2.0 / self.head_dim))
        freqs = positions.astype(jnp.float32)[:, None] * inv_freq[None, :]
        return jnp.cos(freqs), jnp.sin(freqs)            # each [T_pad, D/2]

    def __call__(self, positions, hidden_states, k, v):
        T = hidden_states.shape[0]

        # Attention tile sizes: powers of two, up to (tq=256, tkv=512), clamped
        # for short sequences so the parallel grid axes stay non-trivial.
        t128 = _round_up(T, 128)
        tq = 128
        while tq < 256 and tq * 2 <= t128:
            tq *= 2
        tkv = 128
        while tkv < 512 and tkv * 2 <= t128:
            tkv *= 2
        T_pad = _round_up(T, max(tq, tkv))

        hs = hidden_states.astype(jnp.bfloat16)
        kb = k.astype(jnp.bfloat16)
        vb = v.astype(jnp.bfloat16)
        if T_pad != T:
            hs = jnp.pad(hs, ((0, T_pad - T), (0, 0)))
            kb = jnp.pad(kb, ((0, T_pad - T), (0, 0)))
            vb = jnp.pad(vb, ((0, T_pad - T), (0, 0)))

        # q_proj_swiftkv (lane-dense [T_pad, nH*D], bf16)
        q = linear(hs, self.wq_t, out_dtype=jnp.bfloat16)

        # Rotary tables (RoPE applied to q inside the attention kernel; the
        # reference discards the rotated dummy-k).
        cos, sin = self._rope_tables(positions, T_pad)

        # Causal GQA attention with online softmax.
        attn = swiftkv_attention(q, kb, vb, cos, sin,
                                 scale=self.scaling,
                                 num_heads=self.num_heads,
                                 num_kv_heads=self.num_kv_heads,
                                 head_dim=self.head_dim,
                                 seq_len=T, tq=tq, tkv=tkv)

        # o_proj
        out = linear(attn, self.wo_t, out_dtype=jnp.float32)
        return out[:T]


# ---------------------------------------------------------------------------
if __name__ == "__main__":
    hidden_size = 512
    num_heads = 4
    num_kv_heads = 2
    head_dim = hidden_size // num_heads                 # 128 (Llama-style)
    T = 16                                              # number of tokens

    root = jax.random.PRNGKey(0)
    k_params, k_h, k_k, k_v = jax.random.split(root, 4)

    module = LlamaSwiftKVAttentionPallas(hidden_size, num_heads, num_kv_heads,
                                         rope_theta=10000.0, key=k_params)

    positions = jnp.arange(T, dtype=jnp.int32)
    hidden_states = jax.random.normal(k_h, (T, hidden_size), jnp.float32)
    k_in = jax.random.normal(k_k, (T, num_kv_heads * head_dim), jnp.float32)
    v_in = jax.random.normal(k_v, (T, num_kv_heads * head_dim), jnp.float32)

    out = module(positions, hidden_states, k_in, v_in)
    out = jax.block_until_ready(out)
    assert out.shape == (T, hidden_size)
    assert bool(jnp.all(jnp.isfinite(out)))
    print("KERNEL_OK")
</pallas_src>

<mosaic_0001>
module attributes {stable_mosaic.version = 11 : i64} {
  func.func @_matmul_kernel(%arg0: i32, %arg1: i32, %arg2: i32, %arg3: memref<128x512xbf16, #tpu.memory_space<vmem>>, %arg4: memref<512x256xbf16, #tpu.memory_space<vmem>>, %arg5: memref<128x256xbf16, #tpu.memory_space<vmem>>, %arg6: memref<128x256xf32, #tpu.memory_space<vmem>>) attributes {dimension_semantics = [#tpu.dimension_semantics<parallel>, #tpu.dimension_semantics<parallel>, #tpu.dimension_semantics<arbitrary>], iteration_bounds = array<i64: 1, 2, 1>, scalar_prefetch = 0 : i64, scratch_operands = 1 : i64, tpu.core_type = #tpu.core_type<tc>, window_params = [{transform_indices = @transform_0, window_bounds = array<i64: 128, 512>}, {transform_indices = @transform_1, window_bounds = array<i64: 512, 256>}, {transform_indices = @transform_2, window_bounds = array<i64: 128, 256>}]} {
    %c0_i32 = arith.constant 0 : i32
    %0 = arith.cmpi eq, %arg2, %c0_i32 : i32
    %1 = arith.extui %0 : i1 to i32
    %c0_i32_0 = arith.constant 0 : i32
    %2 = arith.cmpi ne, %1, %c0_i32_0 : i32
    scf.if %2 {
      %cst_10 = arith.constant 0.000000e+00 : f32
      %12 = vector.broadcast %cst_10 : f32 to vector<128x256xf32>
      %c0_11 = arith.constant 0 : index
      %c0_12 = arith.constant 0 : index
      %13 = vector.load %arg6[%c0_11, %c0_12] : memref<128x256xf32, #tpu.memory_space<vmem>>, vector<128x256xf32>
      tpu.vector_store %arg6[%c0_11, %c0_12], %12 {strides = array<i32>} : memref<128x256xf32, #tpu.memory_space<vmem>>, vector<128x256xf32>,
    } else {
    }
    %c0 = arith.constant 0 : index
    %c0_1 = arith.constant 0 : index
    %3 = vector.load %arg6[%c0, %c0_1] : memref<128x256xf32, #tpu.memory_space<vmem>>, vector<128x256xf32>
    %c0_2 = arith.constant 0 : index
    %c0_3 = arith.constant 0 : index
    %4 = vector.load %arg3[%c0_2, %c0_3] : memref<128x512xbf16, #tpu.memory_space<vmem>>, vector<128x512xbf16>
    %c0_4 = arith.constant 0 : index
    %c0_5 = arith.constant 0 : index
    %5 = vector.load %arg4[%c0_4, %c0_5] : memref<512x256xbf16, #tpu.memory_space<vmem>>, vector<512x256xbf16>
    %cst = arith.constant dense<0.000000e+00> : vector<128x256xf32>
    %6 = tpu.matmul %4, %5, %cst {dimension_numbers = #tpu.dot_dimension_numbers<[1], [0], [0], [1], [0, 0, 1, 1], [], []>} : vector<128x512xbf16>, vector<512x256xbf16>, vector<128x256xf32> -> vector<128x256xf32>
    %7 = arith.addf %3, %6 : vector<128x256xf32>
    %c0_6 = arith.constant 0 : index
    %c0_7 = arith.constant 0 : index
    %8 = vector.load %arg6[%c0_6, %c0_7] : memref<128x256xf32, #tpu.memory_space<vmem>>, vector<128x256xf32>
    tpu.vector_store %arg6[%c0_6, %c0_7], %7 {strides = array<i32>} : memref<128x256xf32, #tpu.memory_space<vmem>>, vector<128x256xf32>,
    %c0_i32_8 = arith.constant 0 : i32
    %9 = arith.cmpi eq, %arg2, %c0_i32_8 : i32
    %10 = arith.extui %9 : i1 to i32
    %c0_i32_9 = arith.constant 0 : i32
    %11 = arith.cmpi ne, %10, %c0_i32_9 : i32
    scf.if %11 {
      %c0_10 = arith.constant 0 : index
      %c0_11 = arith.constant 0 : index
      %12 = vector.load %arg6[%c0_10, %c0_11] : memref<128x256xf32, #tpu.memory_space<vmem>>, vector<128x256xf32>
      %13 = arith.truncf %12 : vector<128x256xf32> to vector<128x256xbf16>
      %c0_12 = arith.constant 0 : index
      %c0_13 = arith.constant 0 : index
      %14 = vector.load %arg5[%c0_12, %c0_13] : memref<128x256xbf16, #tpu.memory_space<vmem>>, vector<128x256xbf16>
      tpu.vector_store %arg5[%c0_12, %c0_13], %13 {strides = array<i32>} : memref<128x256xbf16, #tpu.memory_space<vmem>>, vector<128x256xbf16>,
    } else {
    }
    return
  }
  func.func @transform_0(%arg0: i32, %arg1: i32, %arg2: i32) -> (i32, i32) {
    %c0_i32 = arith.constant 0 : i32
    return %arg0, %arg2 : i32, i32
  }
  func.func @transform_1(%arg0: i32, %arg1: i32, %arg2: i32) -> (i32, i32) {
    %c0_i32 = arith.constant 0 : i32
    return %arg2, %arg1 : i32, i32
  }
  func.func @transform_2(%arg0: i32, %arg1: i32, %arg2: i32) -> (i32, i32) {
    %c0_i32 = arith.constant 0 : i32
    return %arg0, %arg1 : i32, i32
  }
}

</mosaic_0001>

<llo_original>
// kernel: tpu_custom_call.1
$region0: #{tpu_custom_call.1}
  #allocation0 [shape = 'u32[]', space=smem, size = 0x4, offset = 0x4, fixed_abs, tag = 'smem constant byte address 0x4 - core index']
  #allocation1 [shape = 'u32[144,128]{1,0:T(1,128)}', space=vmem, size = 0x12000, scoped, tag = 'internal scratch']
  #allocation2 [shape = 'f32[128,256]{1,0:T(8,128)}', space=vmem, size = 0x20000, scoped, tag = 'scratch operand']
  %s0 = inlined_call_operand.hbm [shape: bf16[128,512], index: 0, kind: input, shape index: {}]
  %s1 = inlined_call_operand.hbm [shape: bf16[512,512], index: 1, kind: input, shape index: {}]
  %s2 = inlined_call_operand.hbm [shape: bf16[128,512], index: 2, kind: output, shape index: {}]
  %s3 = sld [smem:[#allocation0]]
  $region57: #{tpu_custom_call.1} parent=0
    _
  %s5 = ssub.s32 1, %s3
  %s6 = scalar_select 0, %s5, %s3
  $region1: #{tpu_custom_call.1} parent=0
    #allocation3 [shape = 'u8[131072]{0}', space=vmem, size = 0x20000, scoped, tag = 'input window, operand 0, single buffered']
    #allocation4 [shape = 's32[2]{0}', space=sflag, size = 0x8, scoped, tag = 'scoped memory for tpu_custom_call.1']
    #allocation5 [shape = 's32[2]{0}', space=sflag, size = 0x8, scoped, tag = 'scoped memory for tpu_custom_call.1']
    #allocation6 [shape = 'u8[524288]{0}', space=vmem, size = 0x80000, scoped, tag = 'input window, operand 1']
    #allocation7 [shape = 's32[2]{0}', space=sflag, size = 0x8, scoped, tag = 'scoped memory for tpu_custom_call.1']
    #allocation8 [shape = 'u8[131072]{0}', space=vmem, size = 0x20000, scoped, tag = 'output window, operand 0']
    %7 = vsyncpa [#allocation4], 0
    %8 = vsyncpa [#allocation7], 0
    %s9 = scalar_lea.sflag [#allocation7], 1
    %10 = vsyncpa %s9, 0
    %11 = vsyncpa [#allocation5], 0
    %s12 = scalar_lea.sflag [#allocation5], 1
    %13 = vsyncpa %s12, 0
    loop: start=0, step=1, limit=4
    $region2: #{tpu_custom_call.1} parent=1 // loop_pre_header
      _
    $region3: #{tpu_custom_call.1} parent=1 // loop_header
      %s15 = sphi 0, %s19
      %p16 = scmp.ge.s32.totalorder %s15, 4
      %s22 = sphi 0, %s41
      %s23 = sphi 0, %s37
      %s24 = sphi 0, %s33
      %s25 = sphi 0, %s22
      %s26 = sphi 0, %s23
      %s27 = sphi 0, %s24
      %s28 = sphi 0, %s25
      %s29 = sphi 0, %s26
      %s30 = sphi 0, %s27
      %s46 = sphi 0, %s48
      %s49 = sphi 0, %s46
      %s50 = sphi 0, %s49
      %s66 = sphi 0, %s50
      %s74 = sphi 0, %s76
      %s77 = sphi 0, %s74
      %s78 = sphi 0, %s77
      %s94 = sphi 0, %s78
      %s102 = sphi 0, %s104
      %s105 = sphi 0, %s102
      %s106 = sphi 0, %s105
      %s122 = sphi 0, %s106
    $region4: #{tpu_custom_call.1} parent=1 // loop_header_branch
      %18 = sbr.rel (%p16) target = $region8
    $region5: #{tpu_custom_call.1} parent=1 // loop_body
      %s20 = ssub.s32 %s15, 1
      %s21 = ssub.s32 %s15, 2
      %s31 = sadd.s32 1, %s24
      %p32 = scmp.ge.s32.totalorder %s31, 1
      %s33 = scalar_select %p32, 0, %s31
      %s34 = sadd.s32 1, %s23
      %s35 = scalar_select %p32, %s34, %s23
      %p36 = scmp.ge.s32.totalorder %s35, 2
      %s37 = scalar_select %p36, 0, %s35
      %s38 = sadd.s32 1, %s22
      %s39 = scalar_select %p36, %s38, %s22
      %p40 = scmp.ge.s32.totalorder %s39, 1
      %s41 = scalar_select %p40, 0, %s39
      %s42 = ssub.s32 %s22, %s41
      %s43 = ssub.s32 %s24, %s33
      %s44 = sor.u32 %s42, %s43
      %p45 = scmp.eq.s32.totalorder %s44, 0
      %s47 = sadd.s32 %s46, 1
      %s48 = scalar_select %p45, %s46, %s47
      %p51 = pneg %p45
      %p52 = scmp.eq.s32.totalorder %s15, 1
      %p53 = por %p51, %p52
      %p54 = scmp.ne.s32.totalorder %s46, %s49
      %p55 = scmp.eq.s32.totalorder %s15, 0
      %p56 = por %p54, %p55
      %p57 = scmp.ne.s32.totalorder %s46, %s49
      %p58 = scmp.eq.s32.totalorder %s20, 1
      %p59 = por %p57, %p58
      %p60 = scmp.ne.s32.totalorder %s49, %s50
      %p61 = scmp.eq.s32.totalorder %s20, 0
      %p62 = por %p60, %p61
      %p63 = scmp.ne.s32.totalorder %s49, %s50
      %p64 = scmp.eq.s32.totalorder %s21, 1
      %p65 = por %p63, %p64
      %p67 = scmp.ne.s32.totalorder %s50, %s66
      %p68 = scmp.eq.s32.totalorder %s21, 0
      %p69 = por %p67, %p68
      %s70 = ssub.s32 %s24, %s33
      %s71 = ssub.s32 %s23, %s37
      %s72 = sor.u32 %s70, %s71
      %p73 = scmp.eq.s32.totalorder %s72, 0
      %s75 = sadd.s32 %s74, 1
      %s76 = scalar_select %p73, %s74, %s75
      %p79 = pneg %p73
      %p80 = scmp.eq.s32.totalorder %s15, 1
      %p81 = por %p79, %p80
      %p82 = scmp.ne.s32.totalorder %s74, %s77
      %p83 = scmp.eq.s32.totalorder %s15, 0
      %p84 = por %p82, %p83
      %p85 = scmp.ne.s32.totalorder %s74, %s77
      %p86 = scmp.eq.s32.totalorder %s20, 1
      %p87 = por %p85, %p86
      %p88 = scmp.ne.s32.totalorder %s77, %s78
      %p89 = scmp.eq.s32.totalorder %s20, 0
      %p90 = por %p88, %p89
      %p91 = scmp.ne.s32.totalorder %s77, %s78
      %p92 = scmp.eq.s32.totalorder %s21, 1
      %p93 = por %p91, %p92
      %p95 = scmp.ne.s32.totalorder %s78, %s94
      %p96 = scmp.eq.s32.totalorder %s21, 0
      %p97 = por %p95, %p96
      %s98 = ssub.s32 %s22, %s41
      %s99 = ssub.s32 %s23, %s37
      %s100 = sor.u32 %s98, %s99
      %p101 = scmp.eq.s32.totalorder %s100, 0
      %s103 = sadd.s32 %s102, 1
      %s104 = scalar_select %p101, %s102, %s103
      %p107 = pneg %p101
      %p108 = scmp.eq.s32.totalorder %s15, 1
      %p109 = por %p107, %p108
      %p110 = scmp.ne.s32.totalorder %s102, %s105
      %p111 = scmp.eq.s32.totalorder %s15, 0
      %p112 = por %p110, %p111
      %p113 = scmp.ne.s32.totalorder %s102, %s105
      %p114 = scmp.eq.s32.totalorder %s20, 1
      %p115 = por %p113, %p114
      %p116 = scmp.ne.s32.totalorder %s105, %s106
      %p117 = scmp.eq.s32.totalorder %s20, 0
      %p118 = por %p116, %p117
      %p119 = scmp.ne.s32.totalorder %s105, %s106
      %p120 = scmp.eq.s32.totalorder %s21, 1
      %p121 = por %p119, %p120
      %p123 = scmp.ne.s32.totalorder %s106, %s122
      %p124 = scmp.eq.s32.totalorder %s21, 0
      %p125 = por %p123, %p124
      %p126 = scmp.le.s32.totalorder 1, %s15
      %p127 = scmp.lt.s32.totalorder %s15, 3
      %p128 = pnand %p126, %p127
      %p129 = pneg %p128
      // Predicated region
      $region9: #{tpu_custom_call.1} parent=5 // pred_check
        _
      $region10: #{tpu_custom_call.1} parent=5 // pred_check_branch
        %131 = sbr.rel (%p128) target = $region12
      $region11: #{tpu_custom_call.1} parent=5 // pred_region
        %s132 = ssub.s32 %s15, 1
        // Predicated region
        $region13: #{tpu_custom_call.1} parent=11 // pred_check
          %p133 = pneg %p62
        $region14: #{tpu_custom_call.1} parent=11 // pred_check_branch
          %135 = sbr.rel (%p133) target = $region16
        $region15: #{tpu_custom_call.1} parent=11 // pred_region
          %s136 = smul.u32 16, %s25
          %s137 = smul.u32 4, %s27
          %s139 = ssub.s32 4096, 4096
          %140 = vsyncadd [#allocation4], %s139
          %s141 = smul.addr %s136, 4
          %s142 = sadd.s32 %s137, %s141
          %s143 = smul.addr %s142, 64
          %s144 = scalar_lea.hbm %s0, %s143
          %s145 = sshll.u32 [#allocation3], 4
          %s146 = int_to_ptr.vmem [resolvable:$true] %s145
          %151 = dma.hbm_to_vmem [thread:$0]  %s144, 4096, %s146, [#allocation4], 256, 256, 16
        $region16: #{tpu_custom_call.1} parent=11 // pred_fallthru
          _
      $region12: #{tpu_custom_call.1} parent=5 // pred_fallthru
        _
      %p152 = scmp.lt.s32.totalorder %s15, 2
      // Predicated region
      $region17: #{tpu_custom_call.1} parent=5 // pred_check
        %p153 = pneg %p152
      $region18: #{tpu_custom_call.1} parent=5 // pred_check_branch
        %155 = sbr.rel (%p153) target = $region20
      $region19: #{tpu_custom_call.1} parent=5 // pred_region
        // Predicated region
        $region21: #{tpu_custom_call.1} parent=19 // pred_check
          %p156 = pneg %p84
        $region22: #{tpu_custom_call.1} parent=19 // pred_check_branch
          %158 = sbr.rel (%p156) target = $region24
        $region23: #{tpu_custom_call.1} parent=19 // pred_region
          %s159 = sand.u32 %s74, 1
          %s160 = scalar_lea.sflag [#allocation7], %s159
          %s161 = sand.u32 %s74, 1
          %s162 = smul.addr %s161, 512
          %s163 = scalar_lea.vmem [#allocation6], %s162
          %s164 = smul.u32 64, %s24
          %s165 = smul.u32 2, %s23
          %s167 = ssub.s32 8192, 8192
          %168 = vsyncadd %s160, %s167
          %s169 = smul.addr %s164, 4
          %s170 = sadd.s32 %s165, %s169
          %s171 = smul.addr %s170, 64
          %s172 = scalar_lea.hbm %s1, %s171
          %s173 = sshll.u32 %s163, 4
          %s174 = int_to_ptr.vmem [resolvable:$true] %s173
          %179 = dma.hbm_to_vmem [thread:$0]  %s172, 8192, %s174, %s160, 256, 128, 8
        $region24: #{tpu_custom_call.1} parent=19 // pred_fallthru
          _
      $region20: #{tpu_custom_call.1} parent=5 // pred_fallthru
        _
      %p180 = scmp.le.s32.totalorder 1, %s15
      %p181 = scmp.lt.s32.totalorder %s15, 3
      %p182 = pnand %p180, %p181
      %p183 = pneg %p182
      // Predicated region
      $region25: #{tpu_custom_call.1} parent=5 // pred_check
        _
      $region26: #{tpu_custom_call.1} parent=5 // pred_check_branch
        %185 = sbr.rel (%p182) target = $region28
      $region27: #{tpu_custom_call.1} parent=5 // pred_region
        %s186 = ssub.s32 %s15, 1
        // Predicated region
        $region29: #{tpu_custom_call.1} parent=27 // pred_check
          %p187 = pneg %p62
        $region30: #{tpu_custom_call.1} parent=27 // pred_check_branch
          %189 = sbr.rel (%p187) target = $region32
        $region31: #{tpu_custom_call.1} parent=27 // pred_region
          %190 = dma.done [#allocation4], 4096
        $region32: #{tpu_custom_call.1} parent=27 // pred_fallthru
          _
        %s191 = sand.u32 %s77, 1
        %s192 = scalar_lea.sflag [#allocation7], %s191
        %s193 = sand.u32 %s77, 1
        %s194 = smul.addr %s193, 512
        %s195 = scalar_lea.vmem [#allocation6], %s194
        // Predicated region
        $region33: #{tpu_custom_call.1} parent=27 // pred_check
          %p196 = pneg %p90
        $region34: #{tpu_custom_call.1} parent=27 // pred_check_branch
          %198 = sbr.rel (%p196) target = $region36
        $region35: #{tpu_custom_call.1} parent=27 // pred_region
          %199 = dma.done %s192, 8192
        $region36: #{tpu_custom_call.1} parent=27 // pred_fallthru
          _
        %p200 = pneg %p62
        %p201 = pneg %p59
        %s202 = sand.u32 %s77, 1
        %s203 = scalar_lea.sflag [#allocation7], %s202
        %s204 = sand.u32 %s77, 1
        %s205 = smul.addr %s204, 512
        %s206 = scalar_lea.vmem [#allocation6], %s205
        %p207 = pneg %p90
        %p208 = pneg %p87
        %p209 = pneg %p118
        %p210 = pneg %p115
        %s211 = sand.u32 %s105, 1
        %s212 = scalar_lea.sflag [#allocation5], %s211
        %s213 = sand.u32 %s105, 1
        %s214 = smul.addr %s213, 128
        %s215 = scalar_lea.vmem [#allocation8], %s214
        %s216 = smul.u32 16, %s25
        %s217 = smul.u32 4, %s27
        %s218 = smul.u32 64, %s27
        %s219 = smul.u32 2, %s26
        %s220 = smul.u32 16, %s25
        %s221 = smul.u32 2, %s26
        %p222 = scmp.eq.s32.totalorder %s27, 0
        // Predicated region
        $region37: #{tpu_custom_call.1} parent=27 // pred_check
          %p223 = pneg %p222
        $region38: #{tpu_custom_call.1} parent=27 // pred_check_branch
          %225 = sbr.rel (%p223) target = $region40
        $region39: #{tpu_custom_call.1} parent=27 // pred_region
          %226 = vst [vmem:[#allocation2] sm:$0xff] 0.0
          %227 = vst [vmem:[#allocation2 + $0x8] sm:$0xff] 0.0
          %228 = vst [vmem:[#allocation2 + $0x10] sm:$0xff] 0.0
          %229 = vst [vmem:[#allocation2 + $0x18] sm:$0xff] 0.0
          %230 = vst [vmem:[#allocation2 + $0x20] sm:$0xff] 0.0
          %231 = vst [vmem:[#allocation2 + $0x28] sm:$0xff] 0.0
          %232 = vst [vmem:[#allocation2 + $0x30] sm:$0xff] 0.0
          %233 = vst [vmem:[#allocation2 + $0x38] sm:$0xff] 0.0
          %234 = vst [vmem:[#allocation2 + $0x40] sm:$0xff] 0.0
          %235 = vst [vmem:[#allocation2 + $0x48] sm:$0xff] 0.0
          %236 = vst [vmem:[#allocation2 + $0x50] sm:$0xff] 0.0
          %237 = vst [vmem:[#allocation2 + $0x58] sm:$0xff] 0.0
          %238 = vst [vmem:[#allocation2 + $0x60] sm:$0xff] 0.0
          %239 = vst [vmem:[#allocation2 + $0x68] sm:$0xff] 0.0
          %240 = vst [vmem:[#allocation2 + $0x70] sm:$0xff] 0.0
          %241 = vst [vmem:[#allocation2 + $0x78] sm:$0xff] 0.0
          %242 = vst [vmem:[#allocation2 + $0x80] sm:$0xff] 0.0
          %243 = vst [vmem:[#allocation2 + $0x88] sm:$0xff] 0.0
          %244 = vst [vmem:[#allocation2 + $0x90] sm:$0xff] 0.0
          %245 = vst [vmem:[#allocation2 + $0x98] sm:$0xff] 0.0
          %246 = vst [vmem:[#allocation2 + $0xa0] sm:$0xff] 0.0
          %247 = vst [vmem:[#allocation2 + $0xa8] sm:$0xff] 0.0
          %248 = vst [vmem:[#allocation2 + $0xb0] sm:$0xff] 0.0
          %249 = vst [vmem:[#allocation2 + $0xb8] sm:$0xff] 0.0
          %250 = vst [vmem:[#allocation2 + $0xc0] sm:$0xff] 0.0
          %251 = vst [vmem:[#allocation2 + $0xc8] sm:$0xff] 0.0
          %252 = vst [vmem:[#allocation2 + $0xd0] sm:$0xff] 0.0
          %253 = vst [vmem:[#allocation2 + $0xd8] sm:$0xff] 0.0
          %254 = vst [vmem:[#allocation2 + $0xe0] sm:$0xff] 0.0
          %255 = vst [vmem:[#allocation2 + $0xe8] sm:$0xff] 0.0
          %256 = vst [vmem:[#allocation2 + $0xf0] sm:$0xff] 0.0
          %257 = vst [vmem:[#allocation2 + $0xf8] sm:$0xff] 0.0
        $region40: #{tpu_custom_call.1} parent=27 // pred_fallthru
          _
        %v258 = vld [vmem:[#allocation2] sm:$0xff]
        %v259 = vld [vmem:[#allocation2 + $0x8] sm:$0xff]
        %v260 = vld [vmem:[#allocation2 + $0x10] sm:$0xff]
        %v261 = vld [vmem:[#allocation2 + $0x18] sm:$0xff]
        %v262 = vld [vmem:[#allocation2 + $0x20] sm:$0xff]
        %v263 = vld [vmem:[#allocation2 + $0x28] sm:$0xff]
        %v264 = vld [vmem:[#allocation2 + $0x30] sm:$0xff]
        %v265 = vld [vmem:[#allocation2 + $0x38] sm:$0xff]
        %v266 = vld [vmem:[#allocation2 + $0x40] sm:$0xff]
        %v267 = vld [vmem:[#allocation2 + $0x48] sm:$0xff]
        %v268 = vld [vmem:[#allocation2 + $0x50] sm:$0xff]
        %v269 = vld [vmem:[#allocation2 + $0x58] sm:$0xff]
        %v270 = vld [vmem:[#allocation2 + $0x60] sm:$0xff]
        %v271 = vld [vmem:[#allocation2 + $0x68] sm:$0xff]
        %v272 = vld [vmem:[#allocation2 + $0x70] sm:$0xff]
        %v273 = vld [vmem:[#allocation2 + $0x78] sm:$0xff]
        %v274 = vld [vmem:[#allocation2 + $0x80] sm:$0xff]
        %v275 = vld [vmem:[#allocation2 + $0x88] sm:$0xff]
        %v276 = vld [vmem:[#allocation2 + $0x90] sm:$0xff]
        %v277 = vld [vmem:[#allocation2 + $0x98] sm:$0xff]
        %v278 = vld [vmem:[#allocation2 + $0xa0] sm:$0xff]
        %v279 = vld [vmem:[#allocation2 + $0xa8] sm:$0xff]
        %v280 = vld [vmem:[#allocation2 + $0xb0] sm:$0xff]
        %v281 = vld [vmem:[#allocation2 + $0xb8] sm:$0xff]
        %v282 = vld [vmem:[#allocation2 + $0xc0] sm:$0xff]
        %v283 = vld [vmem:[#allocation2 + $0xc8] sm:$0xff]
        %v284 = vld [vmem:[#allocation2 + $0xd0] sm:$0xff]
        %v285 = vld [vmem:[#allocation2 + $0xd8] sm:$0xff]
        %v286 = vld [vmem:[#allocation2 + $0xe0] sm:$0xff]
        %v287 = vld [vmem:[#allocation2 + $0xe8] sm:$0xff]
        %v288 = vld [vmem:[#allocation2 + $0xf0] sm:$0xff]
        %v289 = vld [vmem:[#allocation2 + $0xf8] sm:$0xff]
        %v290 = vld [vmem:[#allocation3] sm:$0xff]
        %v291 = vld [vmem:[#allocation3 + $0x8] sm:$0xff]
        %v292 = vld [vmem:[#allocation3 + $0x10] sm:$0xff]
        %v293 = vld [vmem:[#allocation3 + $0x18] sm:$0xff]
        %v294 = vld [vmem:[#allocation3 + $0x20] sm:$0xff]
        %v295 = vld [vmem:[#allocation3 + $0x28] sm:$0xff]
        %v296 = vld [vmem:[#allocation3 + $0x30] sm:$0xff]
        %v297 = vld [vmem:[#allocation3 + $0x38] sm:$0xff]
        %v298 = vld [vmem:[#allocation3 + $0x40] sm:$0xff]
        %v299 = vld [vmem:[#allocation3 + $0x48] sm:$0xff]
        %v300 = vld [vmem:[#allocation3 + $0x50] sm:$0xff]
        %v301 = vld [vmem:[#allocation3 + $0x58] sm:$0xff]
        %v302 = vld [vmem:[#allocation3 + $0x60] sm:$0xff]
        %v303 = vld [vmem:[#allocation3 + $0x68] sm:$0xff]
        %v304 = vld [vmem:[#allocation3 + $0x70] sm:$0xff]
        %v305 = vld [vmem:[#allocation3 + $0x78] sm:$0xff]
        %v306 = vld [vmem:[#allocation3 + $0x80] sm:$0xff]
        %v307 = vld [vmem:[#allocation3 + $0x88] sm:$0xff]
        %v308 = vld [vmem:[#allocation3 + $0x90] sm:$0xff]
        %v309 = vld [vmem:[#allocation3 + $0x98] sm:$0xff]
        %v310 = vld [vmem:[#allocation3 + $0xa0] sm:$0xff]
        %v311 = vld [vmem:[#allocation3 + $0xa8] sm:$0xff]
        %v312 = vld [vmem:[#allocation3 + $0xb0] sm:$0xff]
        %v313 = vld [vmem:[#allocation3 + $0xb8] sm:$0xff]
        %v314 = vld [vmem:[#allocation3 + $0xc0] sm:$0xff]
        %v315 = vld [vmem:[#allocation3 + $0xc8] sm:$0xff]
        %v316 = vld [vmem:[#allocation3 + $0xd0] sm:$0xff]
        %v317 = vld [vmem:[#allocation3 + $0xd8] sm:$0xff]
        %v318 = vld [vmem:[#allocation3 + $0xe0] sm:$0xff]
        %v319 = vld [vmem:[#allocation3 + $0xe8] sm:$0xff]
        %v320 = vld [vmem:[#allocation3 + $0xf0] sm:$0xff]
        %v321 = vld [vmem:[#allocation3 + $0xf8] sm:$0xff]
        %v322 = vld [vmem:[%s195] sm:$0xff]
        %v323 = vld [vmem:[%s195 + $0x8] sm:$0xff]
        %v324 = vld [vmem:[%s195 + $0x10] sm:$0xff]
        %v325 = vld [vmem:[%s195 + $0x18] sm:$0xff]
        %v326 = vld [vmem:[%s195 + $0x20] sm:$0xff]
        %v327 = vld [vmem:[%s195 + $0x28] sm:$0xff]
        %v328 = vld [vmem:[%s195 + $0x30] sm:$0xff]
        %v329 = vld [vmem:[%s195 + $0x38] sm:$0xff]
        %v330 = vld [vmem:[%s195 + $0x40] sm:$0xff]
        %v331 = vld [vmem:[%s195 + $0x48] sm:$0xff]
        %v332 = vld [vmem:[%s195 + $0x50] sm:$0xff]
        %v333 = vld [vmem:[%s195 + $0x58] sm:$0xff]
        %v334 = vld [vmem:[%s195 + $0x60] sm:$0xff]
        %v335 = vld [vmem:[%s195 + $0x68] sm:$0xff]
        %v336 = vld [vmem:[%s195 + $0x70] sm:$0xff]
        %v337 = vld [vmem:[%s195 + $0x78] sm:$0xff]
        %v338 = vld [vmem:[%s195 + $0x80] sm:$0xff]
        %v339 = vld [vmem:[%s195 + $0x88] sm:$0xff]
        %v340 = vld [vmem:[%s195 + $0x90] sm:$0xff]
        %v341 = vld [vmem:[%s195 + $0x98] sm:$0xff]
        %v342 = vld [vmem:[%s195 + $0xa0] sm:$0xff]
        %v343 = vld [vmem:[%s195 + $0xa8] sm:$0xff]
        %v344 = vld [vmem:[%s195 + $0xb0] sm:$0xff]
        %v345 = vld [vmem:[%s195 + $0xb8] sm:$0xff]
        %v346 = vld [vmem:[%s195 + $0xc0] sm:$0xff]
        %v347 = vld [vmem:[%s195 + $0xc8] sm:$0xff]
        %v348 = vld [vmem:[%s195 + $0xd0] sm:$0xff]
        %v349 = vld [vmem:[%s195 + $0xd8] sm:$0xff]
        %v350 = vld [vmem:[%s195 + $0xe0] sm:$0xff]
        %v351 = vld [vmem:[%s195 + $0xe8] sm:$0xff]
        %v352 = vld [vmem:[%s195 + $0xf0] sm:$0xff]
        %v353 = vld [vmem:[%s195 + $0xf8] sm:$0xff]
        %v354 = vld [vmem:[%s195 + $0x100] sm:$0xff]
        %v355 = vld [vmem:[%s195 + $0x108] sm:$0xff]
        %v356 = vld [vmem:[%s195 + $0x110] sm:$0xff]
        %v357 = vld [vmem:[%s195 + $0x118] sm:$0xff]
        %v358 = vld [vmem:[%s195 + $0x120] sm:$0xff]
        %v359 = vld [vmem:[%s195 + $0x128] sm:$0xff]
        %v360 = vld [vmem:[%s195 + $0x130] sm:$0xff]
        %v361 = vld [vmem:[%s195 + $0x138] sm:$0xff]
        %v362 = vld [vmem:[%s195 + $0x140] sm:$0xff]
        %v363 = vld [vmem:[%s195 + $0x148] sm:$0xff]
        %v364 = vld [vmem:[%s195 + $0x150] sm:$0xff]
        %v365 = vld [vmem:[%s195 + $0x158] sm:$0xff]
        %v366 = vld [vmem:[%s195 + $0x160] sm:$0xff]
        %v367 = vld [vmem:[%s195 + $0x168] sm:$0xff]
        %v368 = vld [vmem:[%s195 + $0x170] sm:$0xff]
        %v369 = vld [vmem:[%s195 + $0x178] sm:$0xff]
        %v370 = vld [vmem:[%s195 + $0x180] sm:$0xff]
        %v371 = vld [vmem:[%s195 + $0x188] sm:$0xff]
        %v372 = vld [vmem:[%s195 + $0x190] sm:$0xff]
        %v373 = vld [vmem:[%s195 + $0x198] sm:$0xff]
        %v374 = vld [vmem:[%s195 + $0x1a0] sm:$0xff]
        %v375 = vld [vmem:[%s195 + $0x1a8] sm:$0xff]
        %v376 = vld [vmem:[%s195 + $0x1b0] sm:$0xff]
        %v377 = vld [vmem:[%s195 + $0x1b8] sm:$0xff]
        %v378 = vld [vmem:[%s195 + $0x1c0] sm:$0xff]
        %v379 = vld [vmem:[%s195 + $0x1c8] sm:$0xff]
        %v380 = vld [vmem:[%s195 + $0x1d0] sm:$0xff]
        %v381 = vld [vmem:[%s195 + $0x1d8] sm:$0xff]
        %v382 = vld [vmem:[%s195 + $0x1e0] sm:$0xff]
        %v383 = vld [vmem:[%s195 + $0x1e8] sm:$0xff]
        %v384 = vld [vmem:[%s195 + $0x1f0] sm:$0xff]
        %v385 = vld [vmem:[%s195 + $0x1f8] sm:$0xff]
        %v418 = vunpack.c.l.b16 %v290
        %v419 = vunpack.c.h.b16 %v290
        %v420 = vunpack.c.l.b16 %v291
        %v421 = vunpack.c.h.b16 %v291
        %v422 = vunpack.c.l.b16 %v292
        %v423 = vunpack.c.h.b16 %v292
        %v424 = vunpack.c.l.b16 %v293
        %v425 = vunpack.c.h.b16 %v293
        %v426 = vunpack.c.l.b16 %v294
        %v427 = vunpack.c.h.b16 %v294
        %v428 = vunpack.c.l.b16 %v295
        %v429 = vunpack.c.h.b16 %v295
        %v430 = vunpack.c.l.b16 %v296
        %v431 = vunpack.c.h.b16 %v296
        %v432 = vunpack.c.l.b16 %v297
        %v433 = vunpack.c.h.b16 %v297
        %v434 = vunpack.c.l.b16 %v298
        %v435 = vunpack.c.h.b16 %v298
        %v436 = vunpack.c.l.b16 %v299
        %v437 = vunpack.c.h.b16 %v299
        %v438 = vunpack.c.l.b16 %v300
        %v439 = vunpack.c.h.b16 %v300
        %v440 = vunpack.c.l.b16 %v301
        %v441 = vunpack.c.h.b16 %v301
        %v442 = vunpack.c.l.b16 %v302
        %v443 = vunpack.c.h.b16 %v302
        %v444 = vunpack.c.l.b16 %v303
        %v445 = vunpack.c.h.b16 %v303
        %v446 = vunpack.c.l.b16 %v304
        %v447 = vunpack.c.h.b16 %v304
        %v448 = vunpack.c.l.b16 %v305
        %v449 = vunpack.c.h.b16 %v305
        %v450 = vunpack.c.l.b16 %v306
        %v451 = vunpack.c.h.b16 %v306
        %v452 = vunpack.c.l.b16 %v307
        %v453 = vunpack.c.h.b16 %v307
        %v454 = vunpack.c.l.b16 %v308
        %v455 = vunpack.c.h.b16 %v308
        %v456 = vunpack.c.l.b16 %v309
        %v457 = vunpack.c.h.b16 %v309
        %v458 = vunpack.c.l.b16 %v310
        %v459 = vunpack.c.h.b16 %v310
        %v460 = vunpack.c.l.b16 %v311
        %v461 = vunpack.c.h.b16 %v311
        %v462 = vunpack.c.l.b16 %v312
        %v463 = vunpack.c.h.b16 %v312
        %v464 = vunpack.c.l.b16 %v313
        %v465 = vunpack.c.h.b16 %v313
        %v466 = vunpack.c.l.b16 %v314
        %v467 = vunpack.c.h.b16 %v314
        %v468 = vunpack.c.l.b16 %v315
        %v469 = vunpack.c.h.b16 %v315
        %v470 = vunpack.c.l.b16 %v316
        %v471 = vunpack.c.h.b16 %v316
        %v472 = vunpack.c.l.b16 %v317
        %v473 = vunpack.c.h.b16 %v317
        %v474 = vunpack.c.l.b16 %v318
        %v475 = vunpack.c.h.b16 %v318
        %v476 = vunpack.c.l.b16 %v319
        %v477 = vunpack.c.h.b16 %v319
        %v478 = vunpack.c.l.b16 %v320
        %v479 = vunpack.c.h.b16 %v320
        %v480 = vunpack.c.l.b16 %v321
        %v481 = vunpack.c.h.b16 %v321
        %v482 = vpack.c.b16 %v422, %v418
        %v483 = vpack.c.b16 %v423, %v419
        %v484 = vpack.c.b16 %v424, %v420
        %v485 = vpack.c.b16 %v425, %v421
        %v486 = vpack.c.b16 %v430, %v426
        %v487 = vpack.c.b16 %v431, %v427
        %v488 = vpack.c.b16 %v432, %v428
        %v489 = vpack.c.b16 %v433, %v429
        %v490 = vpack.c.b16 %v438, %v434
        %v491 = vpack.c.b16 %v439, %v435
        %v492 = vpack.c.b16 %v440, %v436
        %v493 = vpack.c.b16 %v441, %v437
        %v494 = vpack.c.b16 %v446, %v442
        %v495 = vpack.c.b16 %v447, %v443
        %v496 = vpack.c.b16 %v448, %v444
        %v497 = vpack.c.b16 %v449, %v445
        %v498 = vpack.c.b16 %v454, %v450
        %v499 = vpack.c.b16 %v455, %v451
        %v500 = vpack.c.b16 %v456, %v452
        %v501 = vpack.c.b16 %v457, %v453
        %v502 = vpack.c.b16 %v462, %v458
        %v503 = vpack.c.b16 %v463, %v459
        %v504 = vpack.c.b16 %v464, %v460
        %v505 = vpack.c.b16 %v465, %v461
        %v506 = vpack.c.b16 %v470, %v466
        %v507 = vpack.c.b16 %v471, %v467
        %v508 = vpack.c.b16 %v472, %v468
        %v509 = vpack.c.b16 %v473, %v469
        %v510 = vpack.c.b16 %v478, %v474
        %v511 = vpack.c.b16 %v479, %v475
        %v512 = vpack.c.b16 %v480, %v476
        %v513 = vpack.c.b16 %v481, %v477
        %v610 = vunpack.c.l.b16 %v322
        %v611 = vunpack.c.h.b16 %v322
        %v612 = vunpack.c.l.b16 %v323
        %v613 = vunpack.c.h.b16 %v323
        %v614 = vunpack.c.l.b16 %v324
        %v615 = vunpack.c.h.b16 %v324
        %v616 = vunpack.c.l.b16 %v325
        %v617 = vunpack.c.h.b16 %v325
        %v618 = vunpack.c.l.b16 %v326
        %v619 = vunpack.c.h.b16 %v326
        %v620 = vunpack.c.l.b16 %v327
        %v621 = vunpack.c.h.b16 %v327
        %v622 = vunpack.c.l.b16 %v328
        %v623 = vunpack.c.h.b16 %v328
        %v624 = vunpack.c.l.b16 %v329
        %v625 = vunpack.c.h.b16 %v329
        %v626 = vunpack.c.l.b16 %v330
        %v627 = vunpack.c.h.b16 %v330
        %v628 = vunpack.c.l.b16 %v331
        %v629 = vunpack.c.h.b16 %v331
        %v630 = vunpack.c.l.b16 %v332
        %v631 = vunpack.c.h.b16 %v332
        %v632 = vunpack.c.l.b16 %v333
        %v633 = vunpack.c.h.b16 %v333
        %v634 = vunpack.c.l.b16 %v334
        %v635 = vunpack.c.h.b16 %v334
        %v636 = vunpack.c.l.b16 %v335
        %v637 = vunpack.c.h.b16 %v335
        %v638 = vunpack.c.l.b16 %v336
        %v639 = vunpack.c.h.b16 %v336
        %v640 = vunpack.c.l.b16 %v337
        %v641 = vunpack.c.h.b16 %v337
        %v642 = vunpack.c.l.b16 %v338
        %v643 = vunpack.c.h.b16 %v338
        %v644 = vunpack.c.l.b16 %v339
        %v645 = vunpack.c.h.b16 %v339
        %v646 = vunpack.c.l.b16 %v340
        %v647 = vunpack.c.h.b16 %v340
        %v648 = vunpack.c.l.b16 %v341
        %v649 = vunpack.c.h.b16 %v341
        %v650 = vunpack.c.l.b16 %v342
        %v651 = vunpack.c.h.b16 %v342
        %v652 = vunpack.c.l.b16 %v343
        %v653 = vunpack.c.h.b16 %v343
        %v654 = vunpack.c.l.b16 %v344
        %v655 = vunpack.c.h.b16 %v344
        %v656 = vunpack.c.l.b16 %v345
        %v657 = vunpack.c.h.b16 %v345
        %v658 = vunpack.c.l.b16 %v346
        %v659 = vunpack.c.h.b16 %v346
        %v660 = vunpack.c.l.b16 %v347
        %v661 = vunpack.c.h.b16 %v347
        %v662 = vunpack.c.l.b16 %v348
        %v663 = vunpack.c.h.b16 %v348
        %v664 = vunpack.c.l.b16 %v349
        %v665 = vunpack.c.h.b16 %v349
        %v666 = vunpack.c.l.b16 %v350
        %v667 = vunpack.c.h.b16 %v350
        %v668 = vunpack.c.l.b16 %v351
        %v669 = vunpack.c.h.b16 %v351
        %v670 = vunpack.c.l.b16 %v352
        %v671 = vunpack.c.h.b16 %v352
        %v672 = vunpack.c.l.b16 %v353
        %v673 = vunpack.c.h.b16 %v353
        %v674 = vunpack.c.l.b16 %v354
        %v675 = vunpack.c.h.b16 %v354
        %v676 = vunpack.c.l.b16 %v355
        %v677 = vunpack.c.h.b16 %v355
        %v678 = vunpack.c.l.b16 %v356
        %v679 = vunpack.c.h.b16 %v356
        %v680 = vunpack.c.l.b16 %v357
        %v681 = vunpack.c.h.b16 %v357
        %v682 = vunpack.c.l.b16 %v358
        %v683 = vunpack.c.h.b16 %v358
        %v684 = vunpack.c.l.b16 %v359
        %v685 = vunpack.c.h.b16 %v359
        %v686 = vunpack.c.l.b16 %v360
        %v687 = vunpack.c.h.b16 %v360
        %v688 = vunpack.c.l.b16 %v361
        %v689 = vunpack.c.h.b16 %v361
        %v690 = vunpack.c.l.b16 %v362
        %v691 = vunpack.c.h.b16 %v362
        %v692 = vunpack.c.l.b16 %v363
        %v693 = vunpack.c.h.b16 %v363
        %v694 = vunpack.c.l.b16 %v364
        %v695 = vunpack.c.h.b16 %v364
        %v696 = vunpack.c.l.b16 %v365
        %v697 = vunpack.c.h.b16 %v365
        %v698 = vunpack.c.l.b16 %v366
        %v699 = vunpack.c.h.b16 %v366
        %v700 = vunpack.c.l.b16 %v367
        %v701 = vunpack.c.h.b16 %v367
        %v702 = vunpack.c.l.b16 %v368
        %v703 = vunpack.c.h.b16 %v368
        %v704 = vunpack.c.l.b16 %v369
        %v705 = vunpack.c.h.b16 %v369
        %v706 = vunpack.c.l.b16 %v370
        %v707 = vunpack.c.h.b16 %v370
        %v708 = vunpack.c.l.b16 %v371
        %v709 = vunpack.c.h.b16 %v371
        %v710 = vunpack.c.l.b16 %v372
        %v711 = vunpack.c.h.b16 %v372
        %v712 = vunpack.c.l.b16 %v373
        %v713 = vunpack.c.h.b16 %v373
        %v714 = vunpack.c.l.b16 %v374
        %v715 = vunpack.c.h.b16 %v374
        %v716 = vunpack.c.l.b16 %v375
        %v717 = vunpack.c.h.b16 %v375
        %v718 = vunpack.c.l.b16 %v376
        %v719 = vunpack.c.h.b16 %v376
        %v720 = vunpack.c.l.b16 %v377
        %v721 = vunpack.c.h.b16 %v377
        %v722 = vunpack.c.l.b16 %v378
        %v723 = vunpack.c.h.b16 %v378
        %v724 = vunpack.c.l.b16 %v379
        %v725 = vunpack.c.h.b16 %v379
        %v726 = vunpack.c.l.b16 %v380
        %v727 = vunpack.c.h.b16 %v380
        %v728 = vunpack.c.l.b16 %v381
        %v729 = vunpack.c.h.b16 %v381
        %v730 = vunpack.c.l.b16 %v382
        %v731 = vunpack.c.h.b16 %v382
        %v732 = vunpack.c.l.b16 %v383
        %v733 = vunpack.c.h.b16 %v383
        %v734 = vunpack.c.l.b16 %v384
        %v735 = vunpack.c.h.b16 %v384
        %v736 = vunpack.c.l.b16 %v385
        %v737 = vunpack.c.h.b16 %v385
        %v738 = vpack.c.b16 %v612, %v610
        %v739 = vpack.c.b16 %v613, %v611
        %v740 = vpack.c.b16 %v616, %v614
        %v741 = vpack.c.b16 %v617, %v615
        %v742 = vpack.c.b16 %v620, %v618
        %v743 = vpack.c.b16 %v621, %v619
        %v744 = vpack.c.b16 %v624, %v622
        %v745 = vpack.c.b16 %v625, %v623
        %v746 = vpack.c.b16 %v628, %v626
        %v747 = vpack.c.b16 %v629, %v627
        %v748 = vpack.c.b16 %v632, %v630
        %v749 = vpack.c.b16 %v633, %v631
        %v750 = vpack.c.b16 %v636, %v634
        %v751 = vpack.c.b16 %v637, %v635
        %v752 = vpack.c.b16 %v640, %v638
        %v753 = vpack.c.b16 %v641, %v639
        %v754 = vpack.c.b16 %v644, %v642
        %v755 = vpack.c.b16 %v645, %v643
        %v756 = vpack.c.b16 %v648, %v646
        %v757 = vpack.c.b16 %v649, %v647
        %v758 = vpack.c.b16 %v652, %v650
        %v759 = vpack.c.b16 %v653, %v651
        %v760 = vpack.c.b16 %v656, %v654
        %v761 = vpack.c.b16 %v657, %v655
        %v762 = vpack.c.b16 %v660, %v658
        %v763 = vpack.c.b16 %v661, %v659
        %v764 = vpack.c.b16 %v664, %v662
        %v765 = vpack.c.b16 %v665, %v663
        %v766 = vpack.c.b16 %v668, %v666
        %v767 = vpack.c.b16 %v669, %v667
        %v768 = vpack.c.b16 %v672, %v670
        %v769 = vpack.c.b16 %v673, %v671
        %v770 = vpack.c.b16 %v676, %v674
        %v771 = vpack.c.b16 %v677, %v675
        %v772 = vpack.c.b16 %v680, %v678
        %v773 = vpack.c.b16 %v681, %v679
        %v774 = vpack.c.b16 %v684, %v682
        %v775 = vpack.c.b16 %v685, %v683
        %v776 = vpack.c.b16 %v688, %v686
        %v777 = vpack.c.b16 %v689, %v687
        %v778 = vpack.c.b16 %v692, %v690
        %v779 = vpack.c.b16 %v693, %v691
        %v780 = vpack.c.b16 %v696, %v694
        %v781 = vpack.c.b16 %v697, %v695
        %v782 = vpack.c.b16 %v700, %v698
        %v783 = vpack.c.b16 %v701, %v699
        %v784 = vpack.c.b16 %v704, %v702
        %v785 = vpack.c.b16 %v705, %v703
        %v786 = vpack.c.b16 %v708, %v706
        %v787 = vpack.c.b16 %v709, %v707
        %v788 = vpack.c.b16 %v712, %v710
        %v789 = vpack.c.b16 %v713, %v711
        %v790 = vpack.c.b16 %v716, %v714
        %v791 = vpack.c.b16 %v717, %v715
        %v792 = vpack.c.b16 %v720, %v718
        %v793 = vpack.c.b16 %v721, %v719
        %v794 = vpack.c.b16 %v724, %v722
        %v795 = vpack.c.b16 %v725, %v723
        %v796 = vpack.c.b16 %v728, %v726
        %v797 = vpack.c.b16 %v729, %v727
        %v798 = vpack.c.b16 %v732, %v730
        %v799 = vpack.c.b16 %v733, %v731
        %v800 = vpack.c.b16 %v736, %v734
        %v801 = vpack.c.b16 %v737, %v735
        %866 = vmatprep.subr.bf16.mxu0 %v753
        %867 = vmatpush1.bf16.msra.mxu0 %v752
        %868 = vmatprep.subr.bf16.mxu0 %v751
        %869 = vmatpush1.bf16.msra.mxu0 %v750
        %870 = vmatprep.subr.bf16.mxu0 %v749
        %871 = vmatpush1.bf16.msra.mxu0 %v748
        %872 = vmatprep.subr.bf16.mxu0 %v747
        %873 = vmatpush1.bf16.msra.mxu0 %v746
        %874 = vmatprep.subr.bf16.mxu0 %v745
        %875 = vmatpush1.bf16.msra.mxu0 %v744
        %876 = vmatprep.subr.bf16.mxu0 %v743
        %877 = vmatpush1.bf16.msra.mxu0 %v742
        %878 = vmatprep.subr.bf16.mxu0 %v741
        %879 = vmatpush1.bf16.msra.mxu0 %v740
        %880 = vmatprep.subr.bf16.mxu0 %v739
        %881 = vmatpush1.bf16.msra.mxu0 %v738
        %882 = vmatprep.subr.bf16.mxu0 %v769
        %883 = vmatpush2.bf16.msra.mxu0 %v768
        %884 = vmatprep.subr.bf16.mxu0 %v767
        %885 = vmatpush2.bf16.msra.mxu0 %v766
        %886 = vmatprep.subr.bf16.mxu0 %v765
        %887 = vmatpush2.bf16.msra.mxu0 %v764
        %888 = vmatprep.subr.bf16.mxu0 %v763
        %889 = vmatpush2.bf16.msra.mxu0 %v762
        %890 = vmatprep.subr.bf16.mxu0 %v761
        %891 = vmatpush2.bf16.msra.mxu0 %v760
        %892 = vmatprep.subr.bf16.mxu0 %v759
        %893 = vmatpush2.bf16.msra.mxu0 %v758
        %894 = vmatprep.subr.bf16.mxu0 %v757
        %895 = vmatpush2.bf16.msra.mxu0 %v756
        %896 = vmatprep.subr.bf16.mxu0 %v755
        %897 = vmatpush2.bf16.msra.mxu0 %v754
        %898 = vmatprep.mubr.bf16.mxu0 %v483
        %899 = vmatmul.mubr.bf16.gmra.mxu0 %v482
        %v900 = vpop.f32.mrf.mxu0
        %v901 = vadd.f32 0.0, %v900
        %v902 = vpop.f32.mrf.mxu0
        %v903 = vadd.f32 0.0, %v902
        %v904 = vpop.f32.mrf.mxu0
        %v905 = vadd.f32 0.0, %v904
        %v906 = vpop.f32.mrf.mxu0
        %v907 = vadd.f32 0.0, %v906
        %908 = vmatprep.mubr.bf16.mxu0 %v487
        %909 = vmatmul.mubr.bf16.gmra.mxu0 %v486
        %v910 = vpop.f32.mrf.mxu0
        %v911 = vadd.f32 0.0, %v910
        %v912 = vpop.f32.mrf.mxu0
        %v913 = vadd.f32 0.0, %v912
        %v914 = vpop.f32.mrf.mxu0
        %v915 = vadd.f32 0.0, %v914
        %v916 = vpop.f32.mrf.mxu0
        %v917 = vadd.f32 0.0, %v916
        %918 = vmatprep.mubr.bf16.mxu0 %v491
        %919 = vmatmul.mubr.bf16.gmra.mxu0 %v490
        %v920 = vpop.f32.mrf.mxu0
        %v921 = vadd.f32 0.0, %v920
        %v922 = vpop.f32.mrf.mxu0
        %v923 = vadd.f32 0.0, %v922
        %v924 = vpop.f32.mrf.mxu0
        %v925 = vadd.f32 0.0, %v924
        %v926 = vpop.f32.mrf.mxu0
        %v927 = vadd.f32 0.0, %v926
        %928 = vmatprep.mubr.bf16.mxu0 %v495
        %929 = vmatmul.mubr.bf16.gmra.mxu0 %v494
        %v930 = vpop.f32.mrf.mxu0
        %v931 = vadd.f32 0.0, %v930
        %v932 = vpop.f32.mrf.mxu0
        %v933 = vadd.f32 0.0, %v932
        %v934 = vpop.f32.mrf.mxu0
        %v935 = vadd.f32 0.0, %v934
        %v936 = vpop.f32.mrf.mxu0
        %v937 = vadd.f32 0.0, %v936
        %938 = vmatprep.mubr.bf16.mxu0 %v499
        %939 = vmatmul.mubr.bf16.gmra.mxu0 %v498
        %v940 = vpop.f32.mrf.mxu0
        %v941 = vadd.f32 0.0, %v940
        %v942 = vpop.f32.mrf.mxu0
        %v943 = vadd.f32 0.0, %v942
        %v944 = vpop.f32.mrf.mxu0
        %v945 = vadd.f32 0.0, %v944
        %v946 = vpop.f32.mrf.mxu0
        %v947 = vadd.f32 0.0, %v946
        %948 = vmatprep.mubr.bf16.mxu0 %v503
        %949 = vmatmul.mubr.bf16.gmra.mxu0 %v502
        %v950 = vpop.f32.mrf.mxu0
        %v951 = vadd.f32 0.0, %v950
        %v952 = vpop.f32.mrf.mxu0
        %v953 = vadd.f32 0.0, %v952
        %v954 = vpop.f32.mrf.mxu0
        %v955 = vadd.f32 0.0, %v954
        %v956 = vpop.f32.mrf.mxu0
        %v957 = vadd.f32 0.0, %v956
        %958 = vmatprep.mubr.bf16.mxu0 %v507
        %959 = vmatmul.mubr.bf16.gmra.mxu0 %v506
        %v960 = vpop.f32.mrf.mxu0
        %v961 = vadd.f32 0.0, %v960
        %v962 = vpop.f32.mrf.mxu0
        %v963 = vadd.f32 0.0, %v962
        %v964 = vpop.f32.mrf.mxu0
        %v965 = vadd.f32 0.0, %v964
        %v966 = vpop.f32.mrf.mxu0
        %v967 = vadd.f32 0.0, %v966
        %968 = vmatprep.mubr.bf16.mxu0 %v511
        %969 = vmatmul.mubr.bf16.gmra.mxu0 %v510
        %v970 = vpop.f32.mrf.mxu0
        %v971 = vadd.f32 0.0, %v970
        %v972 = vpop.f32.mrf.mxu0
        %v973 = vadd.f32 0.0, %v972
        %v974 = vpop.f32.mrf.mxu0
        %v975 = vadd.f32 0.0, %v974
        %v976 = vpop.f32.mrf.mxu0
        %v977 = vadd.f32 0.0, %v976
        %978 = vdwg.mxu0
        %979 = vmatprep.subr.bf16.mxu0 %v785
        %980 = vmatpush1.bf16.msra.mxu0 %v784
        %981 = vmatprep.subr.bf16.mxu0 %v783
        %982 = vmatpush1.bf16.msra.mxu0 %v782
        %983 = vmatprep.subr.bf16.mxu0 %v781
        %984 = vmatpush1.bf16.msra.mxu0 %v780
        %985 = vmatprep.subr.bf16.mxu0 %v779
        %986 = vmatpush1.bf16.msra.mxu0 %v778
        %987 = vmatprep.subr.bf16.mxu0 %v777
        %988 = vmatpush1.bf16.msra.mxu0 %v776
        %989 = vmatprep.subr.bf16.mxu0 %v775
        %990 = vmatpush1.bf16.msra.mxu0 %v774
        %991 = vmatprep.subr.bf16.mxu0 %v773
        %992 = vmatpush1.bf16.msra.mxu0 %v772
        %993 = vmatprep.subr.bf16.mxu0 %v771
        %994 = vmatpush1.bf16.msra.mxu0 %v770
        %995 = vmatprep.subr.bf16.mxu0 %v801
        %996 = vmatpush2.bf16.msra.mxu0 %v800
        %997 = vmatprep.subr.bf16.mxu0 %v799
        %998 = vmatpush2.bf16.msra.mxu0 %v798
        %999 = vmatprep.subr.bf16.mxu0 %v797
        %1000 = vmatpush2.bf16.msra.mxu0 %v796
        %1001 = vmatprep.subr.bf16.mxu0 %v795
        %1002 = vmatpush2.bf16.msra.mxu0 %v794
        %1003 = vmatprep.subr.bf16.mxu0 %v793
        %1004 = vmatpush2.bf16.msra.mxu0 %v792
        %1005 = vmatprep.subr.bf16.mxu0 %v791
        %1006 = vmatpush2.bf16.msra.mxu0 %v790
        %1007 = vmatprep.subr.bf16.mxu0 %v789
        %1008 = vmatpush2.bf16.msra.mxu0 %v788
        %1009 = vmatprep.subr.bf16.mxu0 %v787
        %1010 = vmatpush2.bf16.msra.mxu0 %v786
        %1011 = vmatprep.mubr.bf16.mxu0 %v485
        %1012 = vmatmul.mubr.bf16.gmra.mxu0 %v484
        %v1013 = vpop.f32.mrf.mxu0
        %v1014 = vadd.f32 %v901, %v1013
        %v1015 = vpop.f32.mrf.mxu0
        %v1016 = vadd.f32 %v903, %v1015
        %v1017 = vpop.f32.mrf.mxu0
        %v1018 = vadd.f32 %v905, %v1017
        %v1019 = vpop.f32.mrf.mxu0
        %v1020 = vadd.f32 %v907, %v1019
        %1021 = vmatprep.mubr.bf16.mxu0 %v489
        %1022 = vmatmul.mubr.bf16.gmra.mxu0 %v488
        %v1023 = vpop.f32.mrf.mxu0
        %v1024 = vadd.f32 %v911, %v1023
        %v1025 = vpop.f32.mrf.mxu0
        %v1026 = vadd.f32 %v913, %v1025
        %v1027 = vpop.f32.mrf.mxu0
        %v1028 = vadd.f32 %v915, %v1027
        %v1029 = vpop.f32.mrf.mxu0
        %v1030 = vadd.f32 %v917, %v1029
        %1031 = vmatprep.mubr.bf16.mxu0 %v493
        %1032 = vmatmul.mubr.bf16.gmra.mxu0 %v492
        %v1033 = vpop.f32.mrf.mxu0
        %v1034 = vadd.f32 %v921, %v1033
        %v1035 = vpop.f32.mrf.mxu0
        %v1036 = vadd.f32 %v923, %v1035
        %v1037 = vpop.f32.mrf.mxu0
        %v1038 = vadd.f32 %v925, %v1037
        %v1039 = vpop.f32.mrf.mxu0
        %v1040 = vadd.f32 %v927, %v1039
        %1041 = vmatprep.mubr.bf16.mxu0 %v497
        %1042 = vmatmul.mubr.bf16.gmra.mxu0 %v496
        %v1043 = vpop.f32.mrf.mxu0
        %v1044 = vadd.f32 %v931, %v1043
        %v1045 = vpop.f32.mrf.mxu0
        %v1046 = vadd.f32 %v933, %v1045
        %v1047 = vpop.f32.mrf.mxu0
        %v1048 = vadd.f32 %v935, %v1047
        %v1049 = vpop.f32.mrf.mxu0
        %v1050 = vadd.f32 %v937, %v1049
        %1051 = vmatprep.mubr.bf16.mxu0 %v501
        %1052 = vmatmul.mubr.bf16.gmra.mxu0 %v500
        %v1053 = vpop.f32.mrf.mxu0
        %v1054 = vadd.f32 %v941, %v1053
        %v1055 = vpop.f32.mrf.mxu0
        %v1056 = vadd.f32 %v943, %v1055
        %v1057 = vpop.f32.mrf.mxu0
        %v1058 = vadd.f32 %v945, %v1057
        %v1059 = vpop.f32.mrf.mxu0
        %v1060 = vadd.f32 %v947, %v1059
        %1061 = vmatprep.mubr.bf16.mxu0 %v505
        %1062 = vmatmul.mubr.bf16.gmra.mxu0 %v504
        %v1063 = vpop.f32.mrf.mxu0
        %v1064 = vadd.f32 %v951, %v1063
        %v1065 = vpop.f32.mrf.mxu0
        %v1066 = vadd.f32 %v953, %v1065
        %v1067 = vpop.f32.mrf.mxu0
        %v1068 = vadd.f32 %v955, %v1067
        %v1069 = vpop.f32.mrf.mxu0
        %v1070 = vadd.f32 %v957, %v1069
        %1071 = vmatprep.mubr.bf16.mxu0 %v509
        %1072 = vmatmul.mubr.bf16.gmra.mxu0 %v508
        %v1073 = vpop.f32.mrf.mxu0
        %v1074 = vadd.f32 %v961, %v1073
        %v1075 = vpop.f32.mrf.mxu0
        %v1076 = vadd.f32 %v963, %v1075
        %v1077 = vpop.f32.mrf.mxu0
        %v1078 = vadd.f32 %v965, %v1077
        %v1079 = vpop.f32.mrf.mxu0
        %v1080 = vadd.f32 %v967, %v1079
        %1081 = vmatprep.mubr.bf16.mxu0 %v513
        %1082 = vmatmul.mubr.bf16.gmra.mxu0 %v512
        %v1083 = vpop.f32.mrf.mxu0
        %v1084 = vadd.f32 %v971, %v1083
        %v1085 = vpop.f32.mrf.mxu0
        %v1086 = vadd.f32 %v973, %v1085
        %v1087 = vpop.f32.mrf.mxu0
        %v1088 = vadd.f32 %v975, %v1087
        %v1089 = vpop.f32.mrf.mxu0
        %v1090 = vadd.f32 %v977, %v1089
        %1091 = vdwg.mxu0
        %v1092 = vadd.f32 %v258, %v1014
        %v1093 = vadd.f32 %v259, %v1016
        %v1094 = vadd.f32 %v260, %v1018
        %v1095 = vadd.f32 %v261, %v1020
        %v1096 = vadd.f32 %v262, %v1024
        %v1097 = vadd.f32 %v263, %v1026
        %v1098 = vadd.f32 %v264, %v1028
        %v1099 = vadd.f32 %v265, %v1030
        %v1100 = vadd.f32 %v266, %v1034
        %v1101 = vadd.f32 %v267, %v1036
        %v1102 = vadd.f32 %v268, %v1038
        %v1103 = vadd.f32 %v269, %v1040
        %v1104 = vadd.f32 %v270, %v1044
        %v1105 = vadd.f32 %v271, %v1046
        %v1106 = vadd.f32 %v272, %v1048
        %v1107 = vadd.f32 %v273, %v1050
        %v1108 = vadd.f32 %v274, %v1054
        %v1109 = vadd.f32 %v275, %v1056
        %v1110 = vadd.f32 %v276, %v1058
        %v1111 = vadd.f32 %v277, %v1060
        %v1112 = vadd.f32 %v278, %v1064
        %v1113 = vadd.f32 %v279, %v1066
        %v1114 = vadd.f32 %v280, %v1068
        %v1115 = vadd.f32 %v281, %v1070
        %v1116 = vadd.f32 %v282, %v1074
        %v1117 = vadd.f32 %v283, %v1076
        %v1118 = vadd.f32 %v284, %v1078
        %v1119 = vadd.f32 %v285, %v1080
        %v1120 = vadd.f32 %v286, %v1084
        %v1121 = vadd.f32 %v287, %v1086
        %v1122 = vadd.f32 %v288, %v1088
        %v1123 = vadd.f32 %v289, %v1090
        %1124 = vst [vmem:[#allocation2] sm:$0xff] %v1092
        %1125 = vst [vmem:[#allocation2 + $0x8] sm:$0xff] %v1093
        %1126 = vst [vmem:[#allocation2 + $0x10] sm:$0xff] %v1094
        %1127 = vst [vmem:[#allocation2 + $0x18] sm:$0xff] %v1095
        %1128 = vst [vmem:[#allocation2 + $0x20] sm:$0xff] %v1096
        %1129 = vst [vmem:[#allocation2 + $0x28] sm:$0xff] %v1097
        %1130 = vst [vmem:[#allocation2 + $0x30] sm:$0xff] %v1098
        %1131 = vst [vmem:[#allocation2 + $0x38] sm:$0xff] %v1099
        %1132 = vst [vmem:[#allocation2 + $0x40] sm:$0xff] %v1100
        %1133 = vst [vmem:[#allocation2 + $0x48] sm:$0xff] %v1101
        %1134 = vst [vmem:[#allocation2 + $0x50] sm:$0xff] %v1102
        %1135 = vst [vmem:[#allocation2 + $0x58] sm:$0xff] %v1103
        %1136 = vst [vmem:[#allocation2 + $0x60] sm:$0xff] %v1104
        %1137 = vst [vmem:[#allocation2 + $0x68] sm:$0xff] %v1105
        %1138 = vst [vmem:[#allocation2 + $0x70] sm:$0xff] %v1106
        %1139 = vst [vmem:[#allocation2 + $0x78] sm:$0xff] %v1107
        %1140 = vst [vmem:[#allocation2 + $0x80] sm:$0xff] %v1108
        %1141 = vst [vmem:[#allocation2 + $0x88] sm:$0xff] %v1109
        %1142 = vst [vmem:[#allocation2 + $0x90] sm:$0xff] %v1110
        %1143 = vst [vmem:[#allocation2 + $0x98] sm:$0xff] %v1111
        %1144 = vst [vmem:[#allocation2 + $0xa0] sm:$0xff] %v1112
        %1145 = vst [vmem:[#allocation2 + $0xa8] sm:$0xff] %v1113
        %1146 = vst [vmem:[#allocation2 + $0xb0] sm:$0xff] %v1114
        %1147 = vst [vmem:[#allocation2 + $0xb8] sm:$0xff] %v1115
        %1148 = vst [vmem:[#allocation2 + $0xc0] sm:$0xff] %v1116
        %1149 = vst [vmem:[#allocation2 + $0xc8] sm:$0xff] %v1117
        %1150 = vst [vmem:[#allocation2 + $0xd0] sm:$0xff] %v1118
        %1151 = vst [vmem:[#allocation2 + $0xd8] sm:$0xff] %v1119
        %1152 = vst [vmem:[#allocation2 + $0xe0] sm:$0xff] %v1120
        %1153 = vst [vmem:[#allocation2 + $0xe8] sm:$0xff] %v1121
        %1154 = vst [vmem:[#allocation2 + $0xf0] sm:$0xff] %v1122
        %1155 = vst [vmem:[#allocation2 + $0xf8] sm:$0xff] %v1123
        // Predicated region
        $region41: #{tpu_custom_call.1} parent=27 // pred_check
          %p1156 = pneg %p222
        $region42: #{tpu_custom_call.1} parent=27 // pred_check_branch
          %1158 = sbr.rel (%p1156) target = $region44
        $region43: #{tpu_custom_call.1} parent=27 // pred_region
          %v1159 = vld [vmem:[#allocation2] sm:$0xff]
          %v1160 = vld [vmem:[#allocation2 + $0x8] sm:$0xff]
          %v1161 = vld [vmem:[#allocation2 + $0x10] sm:$0xff]
          %v1162 = vld [vmem:[#allocation2 + $0x18] sm:$0xff]
          %v1163 = vld [vmem:[#allocation2 + $0x20] sm:$0xff]
          %v1164 = vld [vmem:[#allocation2 + $0x28] sm:$0xff]
          %v1165 = vld [vmem:[#allocation2 + $0x30] sm:$0xff]
          %v1166 = vld [vmem:[#allocation2 + $0x38] sm:$0xff]
          %v1167 = vld [vmem:[#allocation2 + $0x40] sm:$0xff]
          %v1168 = vld [vmem:[#allocation2 + $0x48] sm:$0xff]
          %v1169 = vld [vmem:[#allocation2 + $0x50] sm:$0xff]
          %v1170 = vld [vmem:[#allocation2 + $0x58] sm:$0xff]
          %v1171 = vld [vmem:[#allocation2 + $0x60] sm:$0xff]
          %v1172 = vld [vmem:[#allocation2 + $0x68] sm:$0xff]
          %v1173 = vld [vmem:[#allocation2 + $0x70] sm:$0xff]
          %v1174 = vld [vmem:[#allocation2 + $0x78] sm:$0xff]
          %v1175 = vld [vmem:[#allocation2 + $0x80] sm:$0xff]
          %v1176 = vld [vmem:[#allocation2 + $0x88] sm:$0xff]
          %v1177 = vld [vmem:[#allocation2 + $0x90] sm:$0xff]
          %v1178 = vld [vmem:[#allocation2 + $0x98] sm:$0xff]
          %v1179 = vld [vmem:[#allocation2 + $0xa0] sm:$0xff]
          %v1180 = vld [vmem:[#allocation2 + $0xa8] sm:$0xff]
          %v1181 = vld [vmem:[#allocation2 + $0xb0] sm:$0xff]
          %v1182 = vld [vmem:[#allocation2 + $0xb8] sm:$0xff]
          %v1183 = vld [vmem:[#allocation2 + $0xc0] sm:$0xff]
          %v1184 = vld [vmem:[#allocation2 + $0xc8] sm:$0xff]
          %v1185 = vld [vmem:[#allocation2 + $0xd0] sm:$0xff]
          %v1186 = vld [vmem:[#allocation2 + $0xd8] sm:$0xff]
          %v1187 = vld [vmem:[#allocation2 + $0xe0] sm:$0xff]
          %v1188 = vld [vmem:[#allocation2 + $0xe8] sm:$0xff]
          %v1189 = vld [vmem:[#allocation2 + $0xf0] sm:$0xff]
          %v1190 = vld [vmem:[#allocation2 + $0xf8] sm:$0xff]
          %v1191 = vpack.c.bf16 %v1161, %v1159
          %v1192 = vpack.c.bf16 %v1162, %v1160
          %v1193 = vpack.c.bf16 %v1165, %v1163
          %v1194 = vpack.c.bf16 %v1166, %v1164
          %v1195 = vpack.c.bf16 %v1169, %v1167
          %v1196 = vpack.c.bf16 %v1170, %v1168
          %v1197 = vpack.c.bf16 %v1173, %v1171
          %v1198 = vpack.c.bf16 %v1174, %v1172
          %v1199 = vpack.c.bf16 %v1177, %v1175
          %v1200 = vpack.c.bf16 %v1178, %v1176
          %v1201 = vpack.c.bf16 %v1181, %v1179
          %v1202 = vpack.c.bf16 %v1182, %v1180
          %v1203 = vpack.c.bf16 %v1185, %v1183
          %v1204 = vpack.c.bf16 %v1186, %v1184
          %v1205 = vpack.c.bf16 %v1189, %v1187
          %v1206 = vpack.c.bf16 %v1190, %v1188
          %v1223 = vunpack.c.l.b16 %v1191
          %v1224 = vunpack.c.l.b16 %v1192
          %v1225 = vunpack.c.h.b16 %v1191
          %v1226 = vunpack.c.h.b16 %v1192
          %v1227 = vunpack.c.l.b16 %v1193
          %v1228 = vunpack.c.l.b16 %v1194
          %v1229 = vunpack.c.h.b16 %v1193
          %v1230 = vunpack.c.h.b16 %v1194
          %v1231 = vunpack.c.l.b16 %v1195
          %v1232 = vunpack.c.l.b16 %v1196
          %v1233 = vunpack.c.h.b16 %v1195
          %v1234 = vunpack.c.h.b16 %v1196
          %v1235 = vunpack.c.l.b16 %v1197
          %v1236 = vunpack.c.l.b16 %v1198
          %v1237 = vunpack.c.h.b16 %v1197
          %v1238 = vunpack.c.h.b16 %v1198
          %v1239 = vunpack.c.l.b16 %v1199
          %v1240 = vunpack.c.l.b16 %v1200
          %v1241 = vunpack.c.h.b16 %v1199
          %v1242 = vunpack.c.h.b16 %v1200
          %v1243 = vunpack.c.l.b16 %v1201
          %v1244 = vunpack.c.l.b16 %v1202
          %v1245 = vunpack.c.h.b16 %v1201
          %v1246 = vunpack.c.h.b16 %v1202
          %v1247 = vunpack.c.l.b16 %v1203
          %v1248 = vunpack.c.l.b16 %v1204
          %v1249 = vunpack.c.h.b16 %v1203
          %v1250 = vunpack.c.h.b16 %v1204
          %v1251 = vunpack.c.l.b16 %v1205
          %v1252 = vunpack.c.l.b16 %v1206
          %v1253 = vunpack.c.h.b16 %v1205
          %v1254 = vunpack.c.h.b16 %v1206
          %v1255 = vpack.c.b16 %v1224, %v1223
          %v1256 = vpack.c.b16 %v1226, %v1225
          %v1257 = vpack.c.b16 %v1228, %v1227
          %v1258 = vpack.c.b16 %v1230, %v1229
          %v1259 = vpack.c.b16 %v1232, %v1231
          %v1260 = vpack.c.b16 %v1234, %v1233
          %v1261 = vpack.c.b16 %v1236, %v1235
          %v1262 = vpack.c.b16 %v1238, %v1237
          %v1263 = vpack.c.b16 %v1240, %v1239
          %v1264 = vpack.c.b16 %v1242, %v1241
          %v1265 = vpack.c.b16 %v1244, %v1243
          %v1266 = vpack.c.b16 %v1246, %v1245
          %v1267 = vpack.c.b16 %v1248, %v1247
          %v1268 = vpack.c.b16 %v1250, %v1249
          %v1269 = vpack.c.b16 %v1252, %v1251
          %v1270 = vpack.c.b16 %v1254, %v1253
          %1287 = vst [vmem:[%s215] sm:$0xff] %v1255
          %1288 = vst [vmem:[%s215 + $0x8] sm:$0xff] %v1256
          %1289 = vst [vmem:[%s215 + $0x10] sm:$0xff] %v1257
          %1290 = vst [vmem:[%s215 + $0x18] sm:$0xff] %v1258
          %1291 = vst [vmem:[%s215 + $0x20] sm:$0xff] %v1259
          %1292 = vst [vmem:[%s215 + $0x28] sm:$0xff] %v1260
          %1293 = vst [vmem:[%s215 + $0x30] sm:$0xff] %v1261
          %1294 = vst [vmem:[%s215 + $0x38] sm:$0xff] %v1262
          %1295 = vst [vmem:[%s215 + $0x40] sm:$0xff] %v1263
          %1296 = vst [vmem:[%s215 + $0x48] sm:$0xff] %v1264
          %1297 = vst [vmem:[%s215 + $0x50] sm:$0xff] %v1265
          %1298 = vst [vmem:[%s215 + $0x58] sm:$0xff] %v1266
          %1299 = vst [vmem:[%s215 + $0x60] sm:$0xff] %v1267
          %1300 = vst [vmem:[%s215 + $0x68] sm:$0xff] %v1268
          %1301 = vst [vmem:[%s215 + $0x70] sm:$0xff] %v1269
          %1302 = vst [vmem:[%s215 + $0x78] sm:$0xff] %v1270
        $region44: #{tpu_custom_call.1} parent=27 // pred_fallthru
          _
        %s1303 = sand.u32 %s105, 1
        %s1304 = scalar_lea.sflag [#allocation5], %s1303
        %s1305 = sand.u32 %s105, 1
        %s1306 = smul.addr %s1305, 128
        %s1307 = scalar_lea.vmem [#allocation8], %s1306
        // Predicated region
        $region45: #{tpu_custom_call.1} parent=27 // pred_check
          %p1308 = pneg %p115
        $region46: #{tpu_custom_call.1} parent=27 // pred_check_branch
          %1310 = sbr.rel (%p1308) target = $region48
        $region47: #{tpu_custom_call.1} parent=27 // pred_region
          %s1311 = smul.u32 16, %s25
          %s1312 = smul.u32 2, %s26
          %s1314 = ssub.s32 2048, 2048
          %1315 = vsyncadd %s1304, %s1314
          %s1316 = smul.addr %s1311, 4
          %s1317 = sadd.s32 %s1312, %s1316
          %s1318 = smul.addr %s1317, 64
          %s1319 = scalar_lea.hbm %s2, %s1318
          %s1320 = sshll.u32 %s1307, 4
          %s1321 = int_to_ptr.vmem [resolvable:$true] %s1320
          %1326 = dma.vmem_to_hbm [thread:$0]  %s1321, 2048, %s1319, %s1304, 128, 256, 8
        $region48: #{tpu_custom_call.1} parent=27 // pred_fallthru
          _
      $region28: #{tpu_custom_call.1} parent=5 // pred_fallthru
        _
      %p1327 = scmp.le.s32.totalorder 2, %s15
      // Predicated region
      $region49: #{tpu_custom_call.1} parent=5 // pred_check
        %p1328 = pneg %p1327
      $region50: #{tpu_custom_call.1} parent=5 // pred_check_branch
        %1330 = sbr.rel (%p1328) target = $region52
      $region51: #{tpu_custom_call.1} parent=5 // pred_region
        %s1331 = ssub.s32 %s15, 2
        // Predicated region
        $region53: #{tpu_custom_call.1} parent=51 // pred_check
          %p1332 = pneg %p121
        $region54: #{tpu_custom_call.1} parent=51 // pred_check_branch
          %1334 = sbr.rel (%p1332) target = $region56
        $region55: #{tpu_custom_call.1} parent=51 // pred_region
          %s1335 = sand.u32 %s106, 1
          %s1336 = scalar_lea.sflag [#allocation5], %s1335
          %s1337 = sand.u32 %s106, 1
          %s1338 = smul.addr %s1337, 128
          %s1339 = scalar_lea.vmem [#allocation8], %s1338
          %1340 = dma.done %s1336, 2048
        $region56: #{tpu_custom_call.1} parent=51 // pred_fallthru
          _
      $region52: #{tpu_custom_call.1} parent=5 // pred_fallthru
        _
    $region6: #{tpu_custom_call.1} parent=1 // loop_footer
      %s19 = sadd.s32 1, %s15
    $region7: #{tpu_custom_call.1} parent=1 // loop_footer_branch
      %14 = sbr.rel target = $region3
    $region8: #{tpu_custom_call.1} parent=1 // loop_exit
      _
    %1341 = vsyncpa [#allocation4], 1
    %s1342 = scalar_lea.sflag [#allocation4], 1
    %1343 = vsyncpa %s1342, 1
    %1344 = vsyncpa [#allocation7], 1
    %s1345 = scalar_lea.sflag [#allocation7], 1
    %1346 = vsyncpa %s1345, 1
    %1347 = vsyncpa [#allocation5], 1
    %s1348 = scalar_lea.sflag [#allocation5], 1
    %1349 = vsyncpa %s1348, 1

</llo_original>
